<compile_context>
chip_gen: v7x
topology: tpu7x:2x2x1
jax: 0.10.0
libtpu: 0.0.40
codegen_flags: <defaults>
</compile_context>

<pallas_src>
import functools
import math

import jax
import jax.numpy as jnp
from jax.experimental import pallas as pl
from jax.experimental.pallas import tpu as pltpu


def _gelu_tanh(x):
    # GELU with tanh approximation (matches nn.GELU(approximate='tanh')).
    c = math.sqrt(2.0 / math.pi)
    return 0.5 * x * (1.0 + jnp.tanh(c * (x + 0.044715 * x * x * x)))


def _pick_batch_group(B, T, block_rows):
    """Largest G with G | B, G*T <= block_rows, and >= 2 grid steps when B >= 2."""
    if B <= 1:
        return 1
    max_g = max(1, min(block_rows // max(T, 1), B // 2))
    for g in range(min(max_g, B), 0, -1):
        if B % g == 0:
            return g
    return 1


def _vmem_limit_bytes(T, C, H, G, cap_dtype, compute_dtype, out_dtype):
    """Footprint-derived scoped-VMEM request (single-buffered weights + pipeline tiles)."""
    isz = lambda dt: jnp.dtype(dt).itemsize
    weights = (C * H + H * H) * isz(compute_dtype) + 2 * H * 4   # w1, w2 (single copy) + f32 biases
    y_emb = T * C * isz(cap_dtype)                               # resident y_embedding
    x_tiles = 2 * G * T * C * isz(cap_dtype)                     # double-buffered caption tiles
    o_tiles = 2 * G * T * H * isz(out_dtype)                     # double-buffered output tiles
    interm = G * T * C * isz(compute_dtype) + 3 * G * T * H * 4  # in-kernel x / h / acc values
    total = weights + y_emb + x_tiles + o_tiles + interm
    return int(max(total + 8 * 1024 * 1024, 32 * 1024 * 1024))


def _caption_mlp_kernel(drop_ref,           # SMEM (B,)  int32: 1 => use y_embedding
                        cap_ref,            # VMEM (G, T, C) caption dtype (pipelined)
                        y_ref,              # VMEM (T, C)    caption dtype (resident)
                        w1_ref, b1_ref,     # VMEM (C, H) compute dtype, (1, H) f32 (resident)
                        w2_ref, b2_ref,     # VMEM (H, H) compute dtype, (1, H) f32 (resident)
                        o_ref,              # VMEM (G, T, H) out dtype
                        *, group, tokens, compute_dtype, gelu_dtype):
    i = pl.program_id(0)
    y = y_ref[...]                                                   # (T, C)

    # token_drop: per-batch scalar select against the unconditional embedding,
    # then cast once to the compute dtype (all in VMEM, no extra HBM passes).
    xs = []
    for g in range(group):                                           # static, small
        dropped = drop_ref[i * group + g] != 0
        xs.append(jnp.where(dropped, y, cap_ref[g]).astype(compute_dtype))
    x = xs[0] if group == 1 else jnp.concatenate(xs, axis=0)         # (G*T, C)

    # fc1 -> tanh-GELU -> fc2 with f32 MXU accumulation.
    h = jnp.dot(x, w1_ref[...], preferred_element_type=jnp.float32) + b1_ref[...]
    h = _gelu_tanh(h.astype(gelu_dtype))
    h = h.astype(w2_ref.dtype)
    o = jnp.dot(h, w2_ref[...], preferred_element_type=jnp.float32) + b2_ref[...]
    o_ref[...] = o.reshape(group, tokens, -1).astype(o_ref.dtype)


def caption_embedder(caption, force_drop_ids, y_embedding, w1, b1, w2, b2, *,
                     compute_dtype=jnp.bfloat16, out_dtype=None,
                     gelu_dtype=None, block_rows=256):
    """caption: (B, 1, T, C); force_drop_ids: (B,) int or None; returns (B, 1, T, H).

    compute_dtype=jnp.float32 reproduces the PyTorch module numerics; the default
    bf16 path runs the MXU at native rate with f32 accumulation.  out_dtype defaults
    to compute_dtype.  On v5e pass gelu_dtype=jnp.float32 (VPU/EUP are not bf16-native).
    """
    B, one, T, C = caption.shape
    assert one == 1
    assert y_embedding.shape == (T, C)
    H = w1.shape[1]

    compute_dtype = jnp.dtype(compute_dtype)
    out_dtype = compute_dtype if out_dtype is None else jnp.dtype(out_dtype)
    if gelu_dtype is None:
        gelu_dtype = compute_dtype if compute_dtype == jnp.dtype(jnp.bfloat16) else jnp.float32
    gelu_dtype = jnp.dtype(gelu_dtype)

    # TODO(synk): stochastic token_drop (train-time RNG) not implemented; None => no drop.
    if force_drop_ids is None:
        drop = jnp.zeros((B,), jnp.int32)
    else:
        drop = (force_drop_ids == 1).astype(jnp.int32)

    G = _pick_batch_group(B, T, block_rows)
    grid = (B // G,)

    cap3 = caption.reshape(B, T, C)                # metadata-only reshape
    y_emb = y_embedding.astype(caption.dtype)      # tiny (T*C)
    w1c = w1.astype(compute_dtype)
    w2c = w2.astype(compute_dtype)
    b1f = b1.reshape(1, H).astype(jnp.float32)
    b2f = b2.reshape(1, H).astype(jnp.float32)

    # Fully VMEM-resident, single-buffered operands (not part of the pipeline).
    resident = pl.BlockSpec(memory_space=pltpu.MemorySpace.VMEM)

    kernel = functools.partial(_caption_mlp_kernel, group=G, tokens=T,
                               compute_dtype=compute_dtype, gelu_dtype=gelu_dtype)

    out = pl.pallas_call(
        kernel,
        out_shape=jax.ShapeDtypeStruct((B, T, H), out_dtype),
        grid_spec=pltpu.PrefetchScalarGridSpec(
            num_scalar_prefetch=1,
            grid=grid,
            in_specs=[
                pl.BlockSpec((G, T, C), lambda i, _drop: (i, 0, 0)),  # caption tiles (pipelined)
                resident,   # y_embedding
                resident,   # w1
                resident,   # b1
                resident,   # w2
                resident,   # b2
            ],
            out_specs=pl.BlockSpec((G, T, H), lambda i, _drop: (i, 0, 0)),
        ),
        compiler_params=pltpu.CompilerParams(
            dimension_semantics=("parallel",),
            vmem_limit_bytes=_vmem_limit_bytes(T, C, H, G, caption.dtype,
                                               compute_dtype, out_dtype),
        ),
    )(drop, cap3, y_emb, w1c, b1f, w2c, b2f)

    return out.reshape(B, 1, T, H)


def reference(caption, force_drop_ids, y_embedding, w1, b1, w2, b2):
    drop = (force_drop_ids == 1)[:, None, None, None]
    x = jnp.where(drop, y_embedding, caption)
    h = _gelu_tanh(jnp.dot(x, w1, precision=jax.lax.Precision.HIGHEST) + b1)
    return jnp.dot(h, w2, precision=jax.lax.Precision.HIGHEST) + b2


if __name__ == "__main__":
    key = jax.random.PRNGKey(0)
    k_cap, k_emb, k_w1, k_b1, k_w2, k_b2 = jax.random.split(key, 6)

    # Small shapes consistent with the module's forward:
    #   caption: (B, 1, token_num, in_channels); y_embedding: (token_num, in_channels)
    B, token_num, in_channels, hidden_size = 2, 8, 16, 32

    caption = jax.random.normal(k_cap, (B, 1, token_num, in_channels), jnp.float32)
    # register_buffer: randn(token_num, in_channels) / sqrt(in_channels)
    y_embedding = (jax.random.normal(k_emb, (token_num, in_channels), jnp.float32)
                   / math.sqrt(in_channels))

    # Mlp params (fc1: C->H, fc2: H->H), deterministic synthetic init.
    w1 = jax.random.normal(k_w1, (in_channels, hidden_size), jnp.float32) * 0.05
    b1 = jax.random.normal(k_b1, (1, hidden_size), jnp.float32) * 0.01
    w2 = jax.random.normal(k_w2, (hidden_size, hidden_size), jnp.float32) * 0.05
    b2 = jax.random.normal(k_b2, (1, hidden_size), jnp.float32) * 0.01

    # Deterministic CFG drop: batch 0 dropped (uses y_embedding), batch 1 kept.
    force_drop_ids = jnp.array([1, 0], dtype=jnp.int32)

    ref = reference(caption, force_drop_ids, y_embedding, w1, b1, w2, b2)

    # 1) f32 compute path — matches the PyTorch module (tolerance accounts for
    #    possible MXU default-precision differences on f32 matmuls).
    out_f32 = caption_embedder(caption, force_drop_ids, y_embedding, w1, b1, w2, b2,
                               compute_dtype=jnp.float32)
    out_f32 = jax.block_until_ready(out_f32)
    assert out_f32.shape == (B, 1, token_num, hidden_size)
    assert out_f32.dtype == jnp.float32
    assert jnp.allclose(out_f32, ref, atol=2e-3, rtol=2e-2)

    # 2) Default fast path — bf16 weights/activations/GELU on the MXU/VPU,
    #    f32 accumulation, bf16 writeback.
    out_bf16 = caption_embedder(caption, force_drop_ids, y_embedding, w1, b1, w2, b2)
    out_bf16 = jax.block_until_ready(out_bf16)
    assert out_bf16.shape == (B, 1, token_num, hidden_size)
    assert out_bf16.dtype == jnp.bfloat16
    assert jnp.allclose(out_bf16.astype(jnp.float32), ref, atol=3e-2, rtol=5e-2)

    print("KERNEL_OK")
</pallas_src>

<mosaic_0001>
module attributes {stable_mosaic.version = 11 : i64} {
  func.func @_caption_mlp_kernel(%arg0: i32, %arg1: memref<2xi32, #tpu.memory_space<smem>>, %arg2: memref<1x8x16xf32, #tpu.memory_space<vmem>>, %arg3: memref<8x16xf32, #tpu.memory_space<vmem>>, %arg4: memref<16x32xf32, #tpu.memory_space<vmem>>, %arg5: memref<1x32xf32, #tpu.memory_space<vmem>>, %arg6: memref<32x32xf32, #tpu.memory_space<vmem>>, %arg7: memref<1x32xf32, #tpu.memory_space<vmem>>, %arg8: memref<1x8x32xf32, #tpu.memory_space<vmem>>) attributes {dimension_semantics = [#tpu.dimension_semantics<parallel>], iteration_bounds = array<i64: 2>, scalar_prefetch = 1 : i64, scratch_operands = 0 : i64, tpu.core_type = #tpu.core_type<tc>, window_params = [{transform_indices = @transform_0, window_bounds = array<i64: 1, 8, 16>}, {pipeline_mode = #tpu.pipeline_mode<synchronous>, transform_indices = @transform_1, window_bounds = array<i64: 8, 16>}, {pipeline_mode = #tpu.pipeline_mode<synchronous>, transform_indices = @transform_2, window_bounds = array<i64: 16, 32>}, {pipeline_mode = #tpu.pipeline_mode<synchronous>, transform_indices = @transform_3, window_bounds = array<i64: 1, 32>}, {pipeline_mode = #tpu.pipeline_mode<synchronous>, transform_indices = @transform_4, window_bounds = array<i64: 32, 32>}, {pipeline_mode = #tpu.pipeline_mode<synchronous>, transform_indices = @transform_5, window_bounds = array<i64: 1, 32>}, {transform_indices = @transform_6, window_bounds = array<i64: 1, 8, 32>}]} {
    %c0 = arith.constant 0 : index
    %c0_0 = arith.constant 0 : index
    %0 = vector.load %arg3[%c0, %c0_0] : memref<8x16xf32, #tpu.memory_space<vmem>>, vector<8x16xf32>
    %c1_i32 = arith.constant 1 : i32
    %1 = arith.muli %arg0, %c1_i32 : i32
    %c0_i32 = arith.constant 0 : i32
    %2 = arith.addi %1, %c0_i32 : i32
    %3 = arith.index_cast %2 : i32 to index
    %4 = memref.load %arg1[%3] : memref<2xi32, #tpu.memory_space<smem>>
    %c0_i32_1 = arith.constant 0 : i32
    %5 = arith.cmpi ne, %4, %c0_i32_1 : i32
    %c0_2 = arith.constant 0 : index
    %c0_3 = arith.constant 0 : index
    %c0_4 = arith.constant 0 : index
    %6 = vector.load %arg2[%c0_2, %c0_3, %c0_4] : memref<1x8x16xf32, #tpu.memory_space<vmem>>, vector<1x8x16xf32>
    %7 = vector.shape_cast %6 : vector<1x8x16xf32> to vector<8x16xf32>
    %8 = arith.select %5, %0, %7 : vector<8x16xf32>
    %c0_5 = arith.constant 0 : index
    %c0_6 = arith.constant 0 : index
    %9 = vector.load %arg4[%c0_5, %c0_6] : memref<16x32xf32, #tpu.memory_space<vmem>>, vector<16x32xf32>
    %cst = arith.constant dense<0.000000e+00> : vector<8x32xf32>
    %10 = tpu.matmul %8, %9, %cst {dimension_numbers = #tpu.dot_dimension_numbers<[1], [0], [0], [1], [0, 0, 1, 1], [], []>} : vector<8x16xf32>, vector<16x32xf32>, vector<8x32xf32> -> vector<8x32xf32>
    %c0_7 = arith.constant 0 : index
    %c0_8 = arith.constant 0 : index
    %11 = vector.load %arg5[%c0_7, %c0_8] : memref<1x32xf32, #tpu.memory_space<vmem>>, vector<1x32xf32>
    %12 = vector.broadcast %11 : vector<1x32xf32> to vector<8x32xf32>
    %13 = arith.addf %10, %12 : vector<8x32xf32>
    %cst_9 = arith.constant 5.000000e-01 : f32
    %14 = vector.broadcast %cst_9 : f32 to vector<8x32xf32>
    %15 = arith.mulf %14, %13 : vector<8x32xf32>
    %cst_10 = arith.constant 4.471500e-02 : f32
    %16 = vector.broadcast %cst_10 : f32 to vector<8x32xf32>
    %17 = arith.mulf %16, %13 : vector<8x32xf32>
    %18 = arith.mulf %17, %13 : vector<8x32xf32>
    %19 = arith.mulf %18, %13 : vector<8x32xf32>
    %20 = arith.addf %13, %19 : vector<8x32xf32>
    %cst_11 = arith.constant 0.797884583 : f32
    %21 = vector.broadcast %cst_11 : f32 to vector<8x32xf32>
    %22 = arith.mulf %21, %20 : vector<8x32xf32>
    %23 = math.tanh %22 : vector<8x32xf32>
    %cst_12 = arith.constant 1.000000e+00 : f32
    %24 = vector.broadcast %cst_12 : f32 to vector<8x32xf32>
    %25 = arith.addf %24, %23 : vector<8x32xf32>
    %26 = arith.mulf %15, %25 : vector<8x32xf32>
    %c0_13 = arith.constant 0 : index
    %c0_14 = arith.constant 0 : index
    %27 = vector.load %arg6[%c0_13, %c0_14] : memref<32x32xf32, #tpu.memory_space<vmem>>, vector<32x32xf32>
    %cst_15 = arith.constant dense<0.000000e+00> : vector<8x32xf32>
    %28 = tpu.matmul %26, %27, %cst_15 {dimension_numbers = #tpu.dot_dimension_numbers<[1], [0], [0], [1], [0, 0, 1, 1], [], []>} : vector<8x32xf32>, vector<32x32xf32>, vector<8x32xf32> -> vector<8x32xf32>
    %c0_16 = arith.constant 0 : index
    %c0_17 = arith.constant 0 : index
    %29 = vector.load %arg7[%c0_16, %c0_17] : memref<1x32xf32, #tpu.memory_space<vmem>>, vector<1x32xf32>
    %30 = vector.broadcast %29 : vector<1x32xf32> to vector<8x32xf32>
    %31 = arith.addf %28, %30 : vector<8x32xf32>
    %32 = vector.shape_cast %31 : vector<8x32xf32> to vector<1x8x32xf32>
    %c0_18 = arith.constant 0 : index
    %c0_19 = arith.constant 0 : index
    %c0_20 = arith.constant 0 : index
    %33 = vector.load %arg8[%c0_18, %c0_19, %c0_20] : memref<1x8x32xf32, #tpu.memory_space<vmem>>, vector<1x8x32xf32>
    tpu.vector_store %arg8[%c0_18, %c0_19, %c0_20], %32 {strides = array<i32>} : memref<1x8x32xf32, #tpu.memory_space<vmem>>, vector<1x8x32xf32>,
    return
  }
  func.func @transform_0(%arg0: i32, %arg1: memref<2xi32, #tpu.memory_space<smem>>) -> (i32, i32, i32) {
    %c0_i32 = arith.constant 0 : i32
    %c0_i32_0 = arith.constant 0 : i32
    %c0_i32_1 = arith.constant 0 : i32
    return %arg0, %c0_i32, %c0_i32_0 : i32, i32, i32
  }
  func.func @transform_1(%arg0: i32, %arg1: memref<2xi32, #tpu.memory_space<smem>>) -> (i32, i32) {
    %c0_i32 = arith.constant 0 : i32
    %c0_i32_0 = arith.constant 0 : i32
    %c0_i32_1 = arith.constant 0 : i32
    return %c0_i32, %c0_i32_0 : i32, i32
  }
  func.func @transform_2(%arg0: i32, %arg1: memref<2xi32, #tpu.memory_space<smem>>) -> (i32, i32) {
    %c0_i32 = arith.constant 0 : i32
    %c0_i32_0 = arith.constant 0 : i32
    %c0_i32_1 = arith.constant 0 : i32
    return %c0_i32, %c0_i32_0 : i32, i32
  }
  func.func @transform_3(%arg0: i32, %arg1: memref<2xi32, #tpu.memory_space<smem>>) -> (i32, i32) {
    %c0_i32 = arith.constant 0 : i32
    %c0_i32_0 = arith.constant 0 : i32
    %c0_i32_1 = arith.constant 0 : i32
    return %c0_i32, %c0_i32_0 : i32, i32
  }
  func.func @transform_4(%arg0: i32, %arg1: memref<2xi32, #tpu.memory_space<smem>>) -> (i32, i32) {
    %c0_i32 = arith.constant 0 : i32
    %c0_i32_0 = arith.constant 0 : i32
    %c0_i32_1 = arith.constant 0 : i32
    return %c0_i32, %c0_i32_0 : i32, i32
  }
  func.func @transform_5(%arg0: i32, %arg1: memref<2xi32, #tpu.memory_space<smem>>) -> (i32, i32) {
    %c0_i32 = arith.constant 0 : i32
    %c0_i32_0 = arith.constant 0 : i32
    %c0_i32_1 = arith.constant 0 : i32
    return %c0_i32, %c0_i32_0 : i32, i32
  }
  func.func @transform_6(%arg0: i32, %arg1: memref<2xi32, #tpu.memory_space<smem>>) -> (i32, i32, i32) {
    %c0_i32 = arith.constant 0 : i32
    %c0_i32_0 = arith.constant 0 : i32
    %c0_i32_1 = arith.constant 0 : i32
    return %arg0, %c0_i32, %c0_i32_0 : i32, i32, i32
  }
}

</mosaic_0001>

<llo_original>
// kernel: tpu_custom_call.1
$region0: #{tpu_custom_call.1}
  #allocation0 [shape = 'u32[]', space=smem, size = 0x4, offset = 0x4, fixed_abs, tag = 'smem constant byte address 0x4 - core index']
  #allocation1 [shape = 'u32[144,128]{1,0:T(1,128)}', space=vmem, size = 0x12000, scoped, tag = 'internal scratch']
  #allocation2 [shape = 's32[1]{0}', space=sflag, size = 0x4, scoped, tag = 'scoped memory for tpu_custom_call.1']
  #allocation3 [shape = 'u8[512]{0}', space=smem, size = 0x200, scoped, tag = 'prefetched SMEM operand 0']
  %s0 = inlined_call_operand.hbm [shape: s32[2], index: 0, kind: input, shape index: {}]
  %s1 = inlined_call_operand.hbm [shape: f32[2,8,16], index: 1, kind: input, shape index: {}]
  %s2 = inlined_call_operand.hbm [shape: f32[8,16], index: 2, kind: input, shape index: {}]
  %s3 = inlined_call_operand.hbm [shape: f32[16,32], index: 3, kind: input, shape index: {}]
  %s4 = inlined_call_operand.vmem [shape: f32[1,32], index: 4, kind: input, shape index: {}]
  %s5 = inlined_call_operand.hbm [shape: f32[32,32], index: 5, kind: input, shape index: {}]
  %s6 = inlined_call_operand.vmem [shape: f32[1,32], index: 6, kind: input, shape index: {}]
  %s7 = inlined_call_operand.hbm [shape: f32[2,8,32], index: 7, kind: output, shape index: {}]
  %s8 = sld [smem:[#allocation0]]
  $region73: #{tpu_custom_call.1} parent=0
    _
  %s10 = ssub.s32 1, %s8
  %s11 = scalar_select 0, %s10, %s8
  %13 = dma.hbm_to_smem %s0, 16, [#allocation3], [#allocation2]
  %14 = dma.done [#allocation2], 16
  %15 = sfence
  $region1: #{tpu_custom_call.1} parent=0
    #allocation4 [shape = 'u8[8192]{0}', space=vmem, size = 0x2000, scoped, tag = 'input window, operand 1']
    #allocation5 [shape = 's32[2]{0}', space=sflag, size = 0x8, scoped, tag = 'scoped memory for tpu_custom_call.1']
    #allocation6 [shape = 's32[2]{0}', space=sflag, size = 0x8, scoped, tag = 'scoped memory for tpu_custom_call.1']
    #allocation7 [shape = 'u8[4096]{0}', space=vmem, size = 0x1000, scoped, tag = 'input window, operand 2, single buffered']
    #allocation8 [shape = 's32[1]{0}', space=sflag, size = 0x4, scoped, tag = 'scoped memory for tpu_custom_call.1']
    #allocation9 [shape = 'u8[8192]{0}', space=vmem, size = 0x2000, scoped, tag = 'input window, operand 3, single buffered']
    #allocation10 [shape = 'u8[16384]{0}', space=vmem, size = 0x4000, scoped, tag = 'input window, operand 5, single buffered']
    #allocation11 [shape = 's32[1]{0}', space=sflag, size = 0x4, scoped, tag = 'scoped memory for tpu_custom_call.1']
    #allocation12 [shape = 'u8[8192]{0}', space=vmem, size = 0x2000, scoped, tag = 'output window, operand 0']
    %16 = vsyncpa [#allocation5], 0
    %s17 = scalar_lea.sflag [#allocation5], 1
    %18 = vsyncpa %s17, 0
    %19 = vsyncpa [#allocation8], 0
    %20 = vsyncpa [#allocation11], 0
    %21 = vsyncpa [#allocation6], 0
    %s22 = scalar_lea.sflag [#allocation6], 1
    %23 = vsyncpa %s22, 0
    loop: start=0, step=1, limit=4
    $region2: #{tpu_custom_call.1} parent=1 // loop_pre_header
      _
    $region3: #{tpu_custom_call.1} parent=1 // loop_header
      %s25 = sphi 0, %s29
      %p26 = scmp.ge.s32.totalorder %s25, 4
      %s35 = sphi 0, %s37
      %s38 = sphi 0, %s35
      %s39 = sphi 0, %s38
      %s55 = sphi 0, %s39
      %s59 = sphi 0, %s59
      %s61 = sphi 0, %s59
      %s62 = sphi 0, %s61
      %s76 = sphi 0, %s62
      %s80 = sphi 0, %s80
      %s82 = sphi 0, %s80
      %s83 = sphi 0, %s82
      %s97 = sphi 0, %s83
      %s101 = sphi 0, %s101
      %s103 = sphi 0, %s101
      %s104 = sphi 0, %s103
      %s118 = sphi 0, %s104
      %s122 = sphi 0, %s122
      %s124 = sphi 0, %s122
      %s125 = sphi 0, %s124
      %s139 = sphi 0, %s125
      %s143 = sphi 0, %s143
      %s145 = sphi 0, %s143
      %s146 = sphi 0, %s145
      %s160 = sphi 0, %s146
      %s166 = sphi 0, %s168
      %s169 = sphi 0, %s166
      %s170 = sphi 0, %s169
      %s186 = sphi 0, %s170
    $region4: #{tpu_custom_call.1} parent=1 // loop_header_branch
      %28 = sbr.rel (%p26) target = $region8
    $region5: #{tpu_custom_call.1} parent=1 // loop_body
      %s30 = ssub.s32 %s25, 1
      %s31 = ssub.s32 %s25, 2
      %s32 = sadd.s32 %s25, 1
      %s33 = ssub.s32 %s25, %s32
      %p34 = scmp.eq.s32.totalorder %s33, 0
      %s36 = sadd.s32 %s35, 1
      %s37 = scalar_select %p34, %s35, %s36
      %p40 = pneg %p34
      %p41 = scmp.eq.s32.totalorder %s25, 1
      %p42 = por %p40, %p41
      %p43 = scmp.ne.s32.totalorder %s35, %s38
      %p44 = scmp.eq.s32.totalorder %s25, 0
      %p45 = por %p43, %p44
      %p46 = scmp.ne.s32.totalorder %s35, %s38
      %p47 = scmp.eq.s32.totalorder %s30, 1
      %p48 = por %p46, %p47
      %p49 = scmp.ne.s32.totalorder %s38, %s39
      %p50 = scmp.eq.s32.totalorder %s30, 0
      %p51 = por %p49, %p50
      %p52 = scmp.ne.s32.totalorder %s38, %s39
      %p53 = scmp.eq.s32.totalorder %s31, 1
      %p54 = por %p52, %p53
      %p56 = scmp.ne.s32.totalorder %s39, %s55
      %p57 = scmp.eq.s32.totalorder %s31, 0
      %p58 = por %p56, %p57
      %s60 = sadd.s32 %s59, 1
      %p63 = scmp.eq.s32.totalorder %s25, 1
      %p64 = scmp.ne.s32.totalorder %s59, %s61
      %p65 = scmp.eq.s32.totalorder %s25, 0
      %p66 = por %p64, %p65
      %p67 = scmp.ne.s32.totalorder %s59, %s61
      %p68 = scmp.eq.s32.totalorder %s30, 1
      %p69 = por %p67, %p68
      %p70 = scmp.ne.s32.totalorder %s61, %s62
      %p71 = scmp.eq.s32.totalorder %s30, 0
      %p72 = por %p70, %p71
      %p73 = scmp.ne.s32.totalorder %s61, %s62
      %p74 = scmp.eq.s32.totalorder %s31, 1
      %p75 = por %p73, %p74
      %p77 = scmp.ne.s32.totalorder %s62, %s76
      %p78 = scmp.eq.s32.totalorder %s31, 0
      %p79 = por %p77, %p78
      %s81 = sadd.s32 %s80, 1
      %p84 = scmp.eq.s32.totalorder %s25, 1
      %p85 = scmp.ne.s32.totalorder %s80, %s82
      %p86 = scmp.eq.s32.totalorder %s25, 0
      %p87 = por %p85, %p86
      %p88 = scmp.ne.s32.totalorder %s80, %s82
      %p89 = scmp.eq.s32.totalorder %s30, 1
      %p90 = por %p88, %p89
      %p91 = scmp.ne.s32.totalorder %s82, %s83
      %p92 = scmp.eq.s32.totalorder %s30, 0
      %p93 = por %p91, %p92
      %p94 = scmp.ne.s32.totalorder %s82, %s83
      %p95 = scmp.eq.s32.totalorder %s31, 1
      %p96 = por %p94, %p95
      %p98 = scmp.ne.s32.totalorder %s83, %s97
      %p99 = scmp.eq.s32.totalorder %s31, 0
      %p100 = por %p98, %p99
      %s102 = sadd.s32 %s101, 1
      %p105 = scmp.eq.s32.totalorder %s25, 1
      %p106 = scmp.ne.s32.totalorder %s101, %s103
      %p107 = scmp.eq.s32.totalorder %s25, 0
      %p108 = por %p106, %p107
      %p109 = scmp.ne.s32.totalorder %s101, %s103
      %p110 = scmp.eq.s32.totalorder %s30, 1
      %p111 = por %p109, %p110
      %p112 = scmp.ne.s32.totalorder %s103, %s104
      %p113 = scmp.eq.s32.totalorder %s30, 0
      %p114 = por %p112, %p113
      %p115 = scmp.ne.s32.totalorder %s103, %s104
      %p116 = scmp.eq.s32.totalorder %s31, 1
      %p117 = por %p115, %p116
      %p119 = scmp.ne.s32.totalorder %s104, %s118
      %p120 = scmp.eq.s32.totalorder %s31, 0
      %p121 = por %p119, %p120
      %s123 = sadd.s32 %s122, 1
      %p126 = scmp.eq.s32.totalorder %s25, 1
      %p127 = scmp.ne.s32.totalorder %s122, %s124
      %p128 = scmp.eq.s32.totalorder %s25, 0
      %p129 = por %p127, %p128
      %p130 = scmp.ne.s32.totalorder %s122, %s124
      %p131 = scmp.eq.s32.totalorder %s30, 1
      %p132 = por %p130, %p131
      %p133 = scmp.ne.s32.totalorder %s124, %s125
      %p134 = scmp.eq.s32.totalorder %s30, 0
      %p135 = por %p133, %p134
      %p136 = scmp.ne.s32.totalorder %s124, %s125
      %p137 = scmp.eq.s32.totalorder %s31, 1
      %p138 = por %p136, %p137
      %p140 = scmp.ne.s32.totalorder %s125, %s139
      %p141 = scmp.eq.s32.totalorder %s31, 0
      %p142 = por %p140, %p141
      %s144 = sadd.s32 %s143, 1
      %p147 = scmp.eq.s32.totalorder %s25, 1
      %p148 = scmp.ne.s32.totalorder %s143, %s145
      %p149 = scmp.eq.s32.totalorder %s25, 0
      %p150 = por %p148, %p149
      %p151 = scmp.ne.s32.totalorder %s143, %s145
      %p152 = scmp.eq.s32.totalorder %s30, 1
      %p153 = por %p151, %p152
      %p154 = scmp.ne.s32.totalorder %s145, %s146
      %p155 = scmp.eq.s32.totalorder %s30, 0
      %p156 = por %p154, %p155
      %p157 = scmp.ne.s32.totalorder %s145, %s146
      %p158 = scmp.eq.s32.totalorder %s31, 1
      %p159 = por %p157, %p158
      %p161 = scmp.ne.s32.totalorder %s146, %s160
      %p162 = scmp.eq.s32.totalorder %s31, 0
      %p163 = por %p161, %p162
      %s164 = ssub.s32 %s25, %s32
      %p165 = scmp.eq.s32.totalorder %s164, 0
      %s167 = sadd.s32 %s166, 1
      %s168 = scalar_select %p165, %s166, %s167
      %p171 = pneg %p165
      %p172 = scmp.eq.s32.totalorder %s25, 1
      %p173 = por %p171, %p172
      %p174 = scmp.ne.s32.totalorder %s166, %s169
      %p175 = scmp.eq.s32.totalorder %s25, 0
      %p176 = por %p174, %p175
      %p177 = scmp.ne.s32.totalorder %s166, %s169
      %p178 = scmp.eq.s32.totalorder %s30, 1
      %p179 = por %p177, %p178
      %p180 = scmp.ne.s32.totalorder %s169, %s170
      %p181 = scmp.eq.s32.totalorder %s30, 0
      %p182 = por %p180, %p181
      %p183 = scmp.ne.s32.totalorder %s169, %s170
      %p184 = scmp.eq.s32.totalorder %s31, 1
      %p185 = por %p183, %p184
      %p187 = scmp.ne.s32.totalorder %s170, %s186
      %p188 = scmp.eq.s32.totalorder %s31, 0
      %p189 = por %p187, %p188
      %p190 = scmp.le.s32.totalorder 1, %s25
      %p191 = scmp.lt.s32.totalorder %s25, 3
      %p192 = pnand %p190, %p191
      %p193 = pneg %p192
      // Predicated region
      $region9: #{tpu_custom_call.1} parent=5 // pred_check
        _
      $region10: #{tpu_custom_call.1} parent=5 // pred_check_branch
        %195 = sbr.rel (%p192) target = $region12
      $region11: #{tpu_custom_call.1} parent=5 // pred_region
        %s196 = ssub.s32 %s25, 1
        // Predicated region
        $region13: #{tpu_custom_call.1} parent=11 // pred_check
          %p197 = pneg %p72
        $region14: #{tpu_custom_call.1} parent=11 // pred_check_branch
          %199 = sbr.rel (%p197) target = $region16
        $region15: #{tpu_custom_call.1} parent=11 // pred_region
          %s201 = ssub.s32 128, 128
          %202 = vsyncadd [#allocation8], %s201
          %s204 = sshll.u32 [#allocation7], 4
          %s205 = int_to_ptr.vmem [resolvable:$true] %s204
          %207 = dma.hbm_to_vmem [thread:$0]  %s2, 128, %s205, [#allocation8]
        $region16: #{tpu_custom_call.1} parent=11 // pred_fallthru
          _
        // Predicated region
        $region17: #{tpu_custom_call.1} parent=11 // pred_check
          %p208 = pneg %p93
        $region18: #{tpu_custom_call.1} parent=11 // pred_check_branch
          %210 = sbr.rel (%p208) target = $region20
        $region19: #{tpu_custom_call.1} parent=11 // pred_region
          %s212 = ssub.s32 256, 256
          %213 = vsyncadd [#allocation8], %s212
          %s214 = sshll.u32 [#allocation9], 4
          %s215 = int_to_ptr.vmem [resolvable:$true] %s214
          %220 = dma.hbm_to_vmem [thread:$0]  %s3, 256, %s215, [#allocation8], 128, 128, 8
        $region20: #{tpu_custom_call.1} parent=11 // pred_fallthru
          _
        // Predicated region
        $region21: #{tpu_custom_call.1} parent=11 // pred_check
          %p221 = pneg %p114
        $region22: #{tpu_custom_call.1} parent=11 // pred_check_branch
          %223 = sbr.rel (%p221) target = $region24
        $region23: #{tpu_custom_call.1} parent=11 // pred_region
          _
        $region24: #{tpu_custom_call.1} parent=11 // pred_fallthru
          _
        // Predicated region
        $region25: #{tpu_custom_call.1} parent=11 // pred_check
          %p224 = pneg %p135
        $region26: #{tpu_custom_call.1} parent=11 // pred_check_branch
          %226 = sbr.rel (%p224) target = $region28
        $region27: #{tpu_custom_call.1} parent=11 // pred_region
          %s228 = ssub.s32 512, 512
          %229 = vsyncadd [#allocation11], %s228
          %s230 = sshll.u32 [#allocation10], 4
          %s231 = int_to_ptr.vmem [resolvable:$true] %s230
          %236 = dma.hbm_to_vmem [thread:$0]  %s5, 512, %s231, [#allocation11], 128, 128, 8
        $region28: #{tpu_custom_call.1} parent=11 // pred_fallthru
          _
        // Predicated region
        $region29: #{tpu_custom_call.1} parent=11 // pred_check
          %p237 = pneg %p156
        $region30: #{tpu_custom_call.1} parent=11 // pred_check_branch
          %239 = sbr.rel (%p237) target = $region32
        $region31: #{tpu_custom_call.1} parent=11 // pred_region
          _
        $region32: #{tpu_custom_call.1} parent=11 // pred_fallthru
          _
      $region12: #{tpu_custom_call.1} parent=5 // pred_fallthru
        _
      %p240 = scmp.lt.s32.totalorder %s25, 2
      // Predicated region
      $region33: #{tpu_custom_call.1} parent=5 // pred_check
        %p241 = pneg %p240
      $region34: #{tpu_custom_call.1} parent=5 // pred_check_branch
        %243 = sbr.rel (%p241) target = $region36
      $region35: #{tpu_custom_call.1} parent=5 // pred_region
        // Predicated region
        $region37: #{tpu_custom_call.1} parent=35 // pred_check
          %p244 = pneg %p45
        $region38: #{tpu_custom_call.1} parent=35 // pred_check_branch
          %246 = sbr.rel (%p244) target = $region40
        $region39: #{tpu_custom_call.1} parent=35 // pred_region
          %s247 = sand.u32 %s35, 1
          %s248 = scalar_lea.sflag [#allocation5], %s247
          %s249 = sand.u32 %s35, 1
          %s250 = smul.addr %s249, 8
          %s251 = scalar_lea.vmem [#allocation4], %s250
          %s253 = ssub.s32 128, 128
          %254 = vsyncadd %s248, %s253
          %s255 = smul.addr %s25, 128
          %s256 = scalar_lea.hbm %s1, %s255
          %s258 = sshll.u32 %s251, 4
          %s259 = int_to_ptr.vmem [resolvable:$true] %s258
          %261 = dma.hbm_to_vmem [thread:$0]  %s256, 128, %s259, %s248
        $region40: #{tpu_custom_call.1} parent=35 // pred_fallthru
          _
      $region36: #{tpu_custom_call.1} parent=5 // pred_fallthru
        _
      %p262 = scmp.le.s32.totalorder 1, %s25
      %p263 = scmp.lt.s32.totalorder %s25, 3
      %p264 = pnand %p262, %p263
      %p265 = pneg %p264
      // Predicated region
      $region41: #{tpu_custom_call.1} parent=5 // pred_check
        _
      $region42: #{tpu_custom_call.1} parent=5 // pred_check_branch
        %267 = sbr.rel (%p264) target = $region44
      $region43: #{tpu_custom_call.1} parent=5 // pred_region
        %s268 = ssub.s32 %s25, 1
        %s269 = sand.u32 %s38, 1
        %s270 = scalar_lea.sflag [#allocation5], %s269
        %s271 = sand.u32 %s38, 1
        %s272 = smul.addr %s271, 8
        %s273 = scalar_lea.vmem [#allocation4], %s272
        // Predicated region
        $region45: #{tpu_custom_call.1} parent=43 // pred_check
          %p274 = pneg %p51
        $region46: #{tpu_custom_call.1} parent=43 // pred_check_branch
          %276 = sbr.rel (%p274) target = $region48
        $region47: #{tpu_custom_call.1} parent=43 // pred_region
          %277 = dma.done %s270, 128
        $region48: #{tpu_custom_call.1} parent=43 // pred_fallthru
          _
        // Predicated region
        $region49: #{tpu_custom_call.1} parent=43 // pred_check
          %p278 = pneg %p72
        $region50: #{tpu_custom_call.1} parent=43 // pred_check_branch
          %280 = sbr.rel (%p278) target = $region52
        $region51: #{tpu_custom_call.1} parent=43 // pred_region
          %281 = dma.done [#allocation8], 128
        $region52: #{tpu_custom_call.1} parent=43 // pred_fallthru
          _
        // Predicated region
        $region53: #{tpu_custom_call.1} parent=43 // pred_check
          %p282 = pneg %p93
        $region54: #{tpu_custom_call.1} parent=43 // pred_check_branch
          %284 = sbr.rel (%p282) target = $region56
        $region55: #{tpu_custom_call.1} parent=43 // pred_region
          %285 = dma.done [#allocation8], 256
        $region56: #{tpu_custom_call.1} parent=43 // pred_fallthru
          _
        // Predicated region
        $region57: #{tpu_custom_call.1} parent=43 // pred_check
          %p286 = pneg %p135
        $region58: #{tpu_custom_call.1} parent=43 // pred_check_branch
          %288 = sbr.rel (%p286) target = $region60
        $region59: #{tpu_custom_call.1} parent=43 // pred_region
          %289 = dma.done [#allocation11], 512
        $region60: #{tpu_custom_call.1} parent=43 // pred_fallthru
          _
        %s290 = sand.u32 %s38, 1
        %s291 = scalar_lea.sflag [#allocation5], %s290
        %s292 = sand.u32 %s38, 1
        %s293 = smul.addr %s292, 8
        %s294 = scalar_lea.vmem [#allocation4], %s293
        %p295 = pneg %p51
        %p296 = pneg %p48
        %p297 = pneg %p72
        %p298 = pneg %p69
        %p299 = pneg %p93
        %p300 = pneg %p90
        %p301 = pneg %p114
        %p302 = pneg %p111
        %p303 = pneg %p135
        %p304 = pneg %p132
        %p305 = pneg %p156
        %p306 = pneg %p153
        %p307 = pneg %p182
        %p308 = pneg %p179
        %s309 = sand.u32 %s169, 1
        %s310 = scalar_lea.sflag [#allocation6], %s309
        %s311 = sand.u32 %s169, 1
        %s312 = smul.addr %s311, 8
        %s313 = scalar_lea.vmem [#allocation12], %s312
        %v314 = vld [vmem:[#allocation7] sm:$0xff]
        %s315 = sld [smem:[#allocation3 + %s30]]
        %p316 = scmp.ne.s32.totalorder %s315, 0
        %v317 = vld [vmem:[%s273] sm:$0xff]
        %s318 = scalar_select %p316, 1, 0
        %v319 = vstv %s318
        %vm320 = vcmp.eq.s32.totalorder %v319, 1
        %v321 = vsel %vm320, %v314, %v317
        %v322 = vld [vmem:[#allocation9] sm:$0xff]
        %v323 = vld [vmem:[#allocation9 + $0x8] sm:$0xff]
        %v324 = vld [vmem:[%s4] sm:$0x1]
        %v326 = vlaneseq
        %v327 = vshrl.u32 %v326, 7
        %v328 = vsub.s32 0, %v327
        %v329 = vrot.slane %v324, %v328
        %vm331 = vcmask 130048
        %v333 = vsel %vm331, %v321, 0
        %335 = vmatprep.subr.mxu0 0.0
        %336 = vmatpush1.msra.mxu0 %v322
        %337 = vmatprep.subr.mxu0 0.0
        %338 = vmatpush1.msra.mxu0 %v323
        %339 = vmatprep.subr.mxu0 0.0
        %340 = vmatpush1.msra.mxu0 0.0
        %341 = vmatprep.subr.mxu0 0.0
        %342 = vmatpush1.msra.mxu0 0.0
        %343 = vmatprep.subr.mxu0 0.0
        %344 = vmatpush1.msra.mxu0 0.0
        %345 = vmatprep.subr.mxu0 0.0
        %346 = vmatpush1.msra.mxu0 0.0
        %347 = vmatprep.subr.mxu0 0.0
        %348 = vmatpush1.msra.mxu0 0.0
        %349 = vmatprep.subr.mxu0 0.0
        %350 = vmatpush1.msra.mxu0 0.0
        %351 = vmatprep.subr.mxu0 0.0
        %352 = vmatpush1.msra.mxu0 0.0
        %353 = vmatprep.subr.mxu0 0.0
        %354 = vmatpush1.msra.mxu0 0.0
        %355 = vmatprep.subr.mxu0 0.0
        %356 = vmatpush1.msra.mxu0 0.0
        %357 = vmatprep.subr.mxu0 0.0
        %358 = vmatpush1.msra.mxu0 0.0
        %359 = vmatprep.subr.mxu0 0.0
        %360 = vmatpush1.msra.mxu0 0.0
        %361 = vmatprep.subr.mxu0 0.0
        %362 = vmatpush1.msra.mxu0 0.0
        %363 = vmatprep.subr.mxu0 0.0
        %364 = vmatpush1.msra.mxu0 0.0
        %365 = vmatprep.subr.mxu0 0.0
        %366 = vmatpush1.msra.mxu0 0.0
        %367 = vmatprep.subr.mxu0 0.0
        %368 = vmatpush1.msra.mxu0 0.0
        %369 = vmatprep.subr.mxu0 0.0
        %370 = vmatpush1.msra.mxu0 0.0
        %371 = vmatprep.subr.mxu0 0.0
        %372 = vmatpush1.msra.mxu0 0.0
        %373 = vmatprep.subr.mxu0 0.0
        %374 = vmatpush1.msra.mxu0 0.0
        %375 = vmatprep.subr.mxu0 0.0
        %376 = vmatpush1.msra.mxu0 0.0
        %377 = vmatprep.subr.mxu0 0.0
        %378 = vmatpush1.msra.mxu0 0.0
        %379 = vmatprep.subr.mxu0 0.0
        %380 = vmatpush1.msra.mxu0 0.0
        %381 = vmatprep.subr.mxu0 0.0
        %382 = vmatpush1.msra.mxu0 0.0
        %383 = vmatprep.subr.mxu0 0.0
        %384 = vmatpush1.msra.mxu0 0.0
        %385 = vmatprep.subr.mxu0 0.0
        %386 = vmatpush1.msra.mxu0 0.0
        %387 = vmatprep.subr.mxu0 0.0
        %388 = vmatpush1.msra.mxu0 0.0
        %389 = vmatprep.subr.mxu0 0.0
        %390 = vmatpush1.msra.mxu0 0.0
        %391 = vmatprep.subr.mxu0 0.0
        %392 = vmatpush1.msra.mxu0 0.0
        %393 = vmatprep.subr.mxu0 0.0
        %394 = vmatpush1.msra.mxu0 0.0
        %395 = vmatprep.subr.mxu0 0.0
        %396 = vmatpush1.msra.mxu0 0.0
        %397 = vmatprep.subr.mxu0 0.0
        %398 = vmatpush1.msra.mxu0 0.0
        %399 = vmatprep.mubr.f32.mxu0 0.0
        %400 = vmatmul.mubr.f32.gmra.mrb[0].mxu0 %v333
        %v401 = vpop.f32.mrb[0].mxu0
        %v402 = vadd.f32 %v329, %v401
        %v403 = vpop.f32.mrb[0].mxu0
        %404 = vdwg.mxu0
        %v405 = vmul.f32 %v402, 0.5
        %v406 = vmul.f32 %v402, 0.044715
        %v407 = vmul.f32 %v406, %v402
        %v408 = vmul.f32 %v407, %v402
        %v409 = vadd.f32 %v402, %v408
        %v410 = vmul.f32 %v409, 0.7978846
        %v411 = vtanh.pop %v410
        %v412 = vadd.f32 %v411, 1.0
        %v413 = vmul.f32 %v405, %v412
        %v414 = vld [vmem:[#allocation10] sm:$0xff]
        %v415 = vld [vmem:[#allocation10 + $0x8] sm:$0xff]
        %v416 = vld [vmem:[#allocation10 + $0x10] sm:$0xff]
        %v417 = vld [vmem:[#allocation10 + $0x18] sm:$0xff]
        %v418 = vld [vmem:[%s6] sm:$0x1]
        %v420 = vlaneseq
        %v421 = vshrl.u32 %v420, 7
        %v422 = vsub.s32 0, %v421
        %v423 = vrot.slane %v418, %v422
        %vm425 = vcmask 261120
        %v427 = vsel %vm425, %v413, 0
        %429 = vmatprep.subr.mxu0 0.0
        %430 = vmatpush1.msra.mxu0 %v414
        %431 = vmatprep.subr.mxu0 0.0
        %432 = vmatpush1.msra.mxu0 %v415
        %433 = vmatprep.subr.mxu0 0.0
        %434 = vmatpush1.msra.mxu0 %v416
        %435 = vmatprep.subr.mxu0 0.0
        %436 = vmatpush1.msra.mxu0 %v417
        %437 = vmatprep.subr.mxu0 0.0
        %438 = vmatpush1.msra.mxu0 0.0
        %439 = vmatprep.subr.mxu0 0.0
        %440 = vmatpush1.msra.mxu0 0.0
        %441 = vmatprep.subr.mxu0 0.0
        %442 = vmatpush1.msra.mxu0 0.0
        %443 = vmatprep.subr.mxu0 0.0
        %444 = vmatpush1.msra.mxu0 0.0
        %445 = vmatprep.subr.mxu0 0.0
        %446 = vmatpush1.msra.mxu0 0.0
        %447 = vmatprep.subr.mxu0 0.0
        %448 = vmatpush1.msra.mxu0 0.0
        %449 = vmatprep.subr.mxu0 0.0
        %450 = vmatpush1.msra.mxu0 0.0
        %451 = vmatprep.subr.mxu0 0.0
        %452 = vmatpush1.msra.mxu0 0.0
        %453 = vmatprep.subr.mxu0 0.0
        %454 = vmatpush1.msra.mxu0 0.0
        %455 = vmatprep.subr.mxu0 0.0
        %456 = vmatpush1.msra.mxu0 0.0
        %457 = vmatprep.subr.mxu0 0.0
        %458 = vmatpush1.msra.mxu0 0.0
        %459 = vmatprep.subr.mxu0 0.0
        %460 = vmatpush1.msra.mxu0 0.0
        %461 = vmatprep.subr.mxu0 0.0
        %462 = vmatpush1.msra.mxu0 0.0
        %463 = vmatprep.subr.mxu0 0.0
        %464 = vmatpush1.msra.mxu0 0.0
        %465 = vmatprep.subr.mxu0 0.0
        %466 = vmatpush1.msra.mxu0 0.0
        %467 = vmatprep.subr.mxu0 0.0
        %468 = vmatpush1.msra.mxu0 0.0
        %469 = vmatprep.subr.mxu0 0.0
        %470 = vmatpush1.msra.mxu0 0.0
        %471 = vmatprep.subr.mxu0 0.0
        %472 = vmatpush1.msra.mxu0 0.0
        %473 = vmatprep.subr.mxu0 0.0
        %474 = vmatpush1.msra.mxu0 0.0
        %475 = vmatprep.subr.mxu0 0.0
        %476 = vmatpush1.msra.mxu0 0.0
        %477 = vmatprep.subr.mxu0 0.0
        %478 = vmatpush1.msra.mxu0 0.0
        %479 = vmatprep.subr.mxu0 0.0
        %480 = vmatpush1.msra.mxu0 0.0
        %481 = vmatprep.subr.mxu0 0.0
        %482 = vmatpush1.msra.mxu0 0.0
        %483 = vmatprep.subr.mxu0 0.0
        %484 = vmatpush1.msra.mxu0 0.0
        %485 = vmatprep.subr.mxu0 0.0
        %486 = vmatpush1.msra.mxu0 0.0
        %487 = vmatprep.subr.mxu0 0.0
        %488 = vmatpush1.msra.mxu0 0.0
        %489 = vmatprep.subr.mxu0 0.0
        %490 = vmatpush1.msra.mxu0 0.0
        %491 = vmatprep.subr.mxu0 0.0
        %492 = vmatpush1.msra.mxu0 0.0
        %493 = vmatprep.mubr.f32.mxu0 0.0
        %494 = vmatmul.mubr.f32.gmra.mrb[0].mxu0 %v427
        %v495 = vpop.f32.mrb[0].mxu0
        %v496 = vadd.f32 %v423, %v495
        %v497 = vpop.f32.mrb[0].mxu0
        %498 = vdwg.mxu0
        %499 = vst.msk [vmem:[%s313] sm:$0xff] %vm425, %v496
        %s500 = sand.u32 %s169, 1
        %s501 = scalar_lea.sflag [#allocation6], %s500
        %s502 = sand.u32 %s169, 1
        %s503 = smul.addr %s502, 8
        %s504 = scalar_lea.vmem [#allocation12], %s503
        // Predicated region
        $region61: #{tpu_custom_call.1} parent=43 // pred_check
          %p505 = pneg %p179
        $region62: #{tpu_custom_call.1} parent=43 // pred_check_branch
          %507 = sbr.rel (%p505) target = $region64
        $region63: #{tpu_custom_call.1} parent=43 // pred_region
          %s509 = ssub.s32 128, 128
          %510 = vsyncadd %s501, %s509
          %s511 = smul.addr %s30, 128
          %s512 = scalar_lea.hbm %s7, %s511
          %s514 = sshll.u32 %s504, 4
          %s515 = int_to_ptr.vmem [resolvable:$true] %s514
          %517 = dma.vmem_to_hbm [thread:$0]  %s515, 128, %s512, %s501
        $region64: #{tpu_custom_call.1} parent=43 // pred_fallthru
          _
      $region44: #{tpu_custom_call.1} parent=5 // pred_fallthru
        _
      %p518 = scmp.le.s32.totalorder 2, %s25
      // Predicated region
      $region65: #{tpu_custom_call.1} parent=5 // pred_check
        %p519 = pneg %p518
      $region66: #{tpu_custom_call.1} parent=5 // pred_check_branch
        %521 = sbr.rel (%p519) target = $region68
      $region67: #{tpu_custom_call.1} parent=5 // pred_region
        %s522 = ssub.s32 %s25, 2
        // Predicated region
        $region69: #{tpu_custom_call.1} parent=67 // pred_check
          %p523 = pneg %p185
        $region70: #{tpu_custom_call.1} parent=67 // pred_check_branch
          %525 = sbr.rel (%p523) target = $region72
        $region71: #{tpu_custom_call.1} parent=67 // pred_region
          %s526 = sand.u32 %s170, 1
          %s527 = scalar_lea.sflag [#allocation6], %s526
          %s528 = sand.u32 %s170, 1
          %s529 = smul.addr %s528, 8
          %s530 = scalar_lea.vmem [#allocation12], %s529
          %531 = dma.done %s527, 128
        $region72: #{tpu_custom_call.1} parent=67 // pred_fallthru
          _
      $region68: #{tpu_custom_call.1} parent=5 // pred_fallthru
        _
    $region6: #{tpu_custom_call.1} parent=1 // loop_footer
      %s29 = sadd.s32 1, %s25
    $region7: #{tpu_custom_call.1} parent=1 // loop_footer_branch
      %24 = sbr.rel target = $region3
    $region8: #{tpu_custom_call.1} parent=1 // loop_exit
      _
    %532 = vsyncpa [#allocation5], 1
    %s533 = scalar_lea.sflag [#allocation5], 1
    %534 = vsyncpa %s533, 1
    %535 = vsyncpa [#allocation8], 1
    %536 = vsyncpa [#allocation11], 1
    %537 = vsyncpa [#allocation6], 1
    %s538 = scalar_lea.sflag [#allocation6], 1
    %539 = vsyncpa %s538, 1

</llo_original>
